<compile_context>
chip_gen: v5e
topology: v5e:2x2
jax: 0.10.0
libtpu: 0.0.40
codegen_flags: <defaults>
</compile_context>

<pallas_src>
import math

import jax
import jax.numpy as jnp
from jax.experimental import pallas as pl
from jax.experimental.pallas import tpu as pltpu

_SUBLANE = {4: 8, 2: 16, 1: 32}        # native second-minor tile per itemsize
_LANE = 128
_HEADROOM_BYTES = 2 << 20              # headroom for Mosaic internal scratch


def _lcm(a, b):
    return a * b // math.gcd(a, b)


def _squeezed_dim():
    # None is the legacy spelling of a squeezed block dim; prefer pl.Squeezed().
    return pl.Squeezed() if hasattr(pl, "Squeezed") else None


def _chip_budgets():
    """Per-generation tiling budgets derived from physical VMEM."""
    try:
        vmem_cap = int(pltpu.get_tpu_info().vmem_capacity_bytes)
    except Exception:                  # no info available -> assume the small chip
        vmem_cap = 64 << 20
    small_vmem = vmem_cap <= (96 << 20)          # v7x-class: 64 MiB / TC, 2 TCs
    cap = (vmem_cap * 3) // 4                    # ~48 MiB (v7x) / ~96 MiB (v5e/v6e)
    target_steps = 8 if small_vmem else 4        # 2 TCs need deeper grids
    min_step_bytes = (2 << 20) if small_vmem else (1 << 20)
    return cap, target_steps, min_step_bytes


def _normalize(shape, perm):
    """Drop size-1 axes and coalesce runs of input axes that stay adjacent and
    in-order in the output.  Returns (reduced_shape, reduced_perm)."""
    keep = [a for a in range(len(shape)) if shape[a] > 1]
    if not keep:
        return (), ()
    remap = {a: i for i, a in enumerate(keep)}
    shape1 = [shape[a] for a in keep]
    perm1 = [remap[a] for a in perm if a in remap]

    groups = []                                   # input-axis runs, in output order
    for a in perm1:
        if groups and a == groups[-1][-1] + 1:
            groups[-1].append(a)
        else:
            groups.append([a])
    in_order = sorted(range(len(groups)), key=lambda g: groups[g][0])
    new_shape = tuple(math.prod(shape1[a] for a in groups[g]) for g in in_order)
    new_axis_of_group = {g: i for i, g in enumerate(in_order)}
    new_perm = tuple(new_axis_of_group[g] for g in range(len(groups)))
    return new_shape, new_perm


def _build_permute_call(x_shape, dtype, perm, *, max_step_bytes=None,
                        input_buffers=None):
    """Returns a pallas_call callable, or None if the shape cannot be tiled
    within the per-chip VMEM budget (caller falls back to XLA)."""
    n = len(x_shape)
    assert n >= 2
    inv = [0] * n
    for k, a in enumerate(perm):
        inv[a] = k
    out_shape = tuple(x_shape[a] for a in perm)
    itemsize = jnp.dtype(dtype).itemsize
    sublane = _SUBLANE.get(itemsize, 8)

    vmem_cap, target_steps, min_step_bytes = _chip_budgets()
    # Per step: 2x double-buffered input + 2x output + ~1 slab transpose temp.
    slab_budget = max((vmem_cap - _HEADROOM_BYTES) // 5, 256 << 10)
    if max_step_bytes is not None:
        slab_budget = min(slab_budget, int(max_step_bytes))

    # Tiling legality: a block dim smaller than the full array dim must be a
    # sublane multiple in a second-minor position and a 128-multiple in a lane
    # position, on whichever side(s) (input/output) that axis lands there.
    def required_multiple(a):
        r = 1
        for pos in (a, inv[a]):
            if pos == n - 1:
                r = _lcm(r, _LANE)
            elif pos == n - 2:
                r = _lcm(r, sublane)
        return r

    req = [required_multiple(a) for a in range(n)]

    def legal_chunks(a):               # strictly-smaller-than-full legal block sizes
        return [c for c in range(req[a], x_shape[a], req[a]) if x_shape[a] % c == 0]

    block = list(x_shape)              # start from the full array, split down

    def slab_bytes():
        return math.prod(block) * itemsize

    def num_steps():
        s = 1
        for a in range(n):
            s *= x_shape[a] // block[a]
        return s

    # Split priority: axes that are leading on both sides first (unconstrained,
    # keeps per-step writeback contiguous), then second-minor axes, lane last.
    def split_class(a):
        if req[a] >= _LANE:
            return 2
        return 1 if req[a] > 1 else 0

    order = sorted(range(n), key=lambda a: (split_class(a), inv[a]))

    # Phase 1: shrink until the slab fits the per-step VMEM budget.
    for a in order:
        if slab_bytes() <= slab_budget:
            break
        chunks = legal_chunks(a)
        if not chunks:
            continue
        per_unit = slab_bytes() // block[a]
        fitting = [c for c in chunks if per_unit * c <= slab_budget]
        block[a] = max(fitting) if fitting else min(chunks)

    # Phase 2: deepen the grid (pipelining depth / megacore sharding) without
    # dropping below the per-chip minimum bytes-per-step.
    for a in order:
        if num_steps() >= target_steps:
            break
        per_unit = slab_bytes() // block[a]
        cands = [c for c in legal_chunks(a)
                 if c < block[a] and per_unit * c >= min_step_bytes]
        if not cands:
            continue
        cur_axis_steps = x_shape[a] // block[a]
        enough = [c for c in cands
                  if (num_steps() // cur_axis_steps) * (x_shape[a] // c) >= target_steps]
        block[a] = max(enough) if enough else min(cands)

    grid_axes = [a for a in range(n) if block[a] < x_shape[a]]
    grid_axes.sort(key=lambda a: inv[a])     # consecutive steps -> adjacent output
    grid = tuple(x_shape[a] // block[a] for a in grid_axes) or (1,)
    pos_of_axis = {a: t for t, a in enumerate(grid_axes)}

    def in_index_map(*g):
        return tuple(g[pos_of_axis[a]] if a in pos_of_axis else 0 for a in range(n))

    def out_index_map(*g):
        return tuple(g[pos_of_axis[perm[k]]] if perm[k] in pos_of_axis else 0
                     for k in range(n))

    # Axes kept in the kernel refs: everything that sits in the last-two dims
    # on either side, plus any axis with a >1 block.  Size-1 grid axes are
    # squeezed so the kernel sees only the resident slab (no unit-dim plumbing).
    resident = {n - 2, n - 1, perm[n - 2], perm[n - 1]}
    kept = {a for a in range(n) if a in resident or block[a] > 1}

    def dim_spec(a):
        return block[a] if a in kept else _squeezed_dim()

    in_block = tuple(dim_spec(a) for a in range(n))
    out_block = tuple(dim_spec(perm[k]) for k in range(n))

    big_in = [a for a in range(n) if a in kept]
    big_out = [perm[k] for k in range(n) if perm[k] in kept]
    induced = tuple(big_in.index(a) for a in big_out)
    pure_copy = induced == tuple(range(len(big_in)))

    if pure_copy:
        def kernel(x_ref, o_ref):        # order-preserving slab -> pure DMA relayout
            o_ref[...] = x_ref[...]
    else:
        def kernel(x_ref, o_ref):        # only the bounded resident slab is moved
            # NOTE(v5e): slab is capped by slab_budget, so a lane-moving vxpose
            # never exceeds a few MiB per step (keeps vst/XLU pressure bounded).
            o_ref[...] = jnp.transpose(x_ref[...], induced)

    slab = slab_bytes()
    in_bufs = input_buffers if (input_buffers and input_buffers > 2) else 2
    needed = (in_bufs + 2) * slab + (0 if pure_copy else slab) + _HEADROOM_BYTES
    if needed > vmem_cap:
        return None                      # cannot tile within VMEM -> XLA fallback
    vmem_limit = int(min(vmem_cap, max(needed, 8 << 20)))

    if in_bufs > 2:
        # TODO(synk): sweep pl.Buffered(3) on v5e/v6e (128 MiB VMEM) deep grids.
        in_spec = pl.BlockSpec(in_block, in_index_map,
                               pipeline_mode=pl.Buffered(in_bufs))
    else:
        in_spec = pl.BlockSpec(in_block, in_index_map)

    total_bytes = math.prod(x_shape) * itemsize

    return pl.pallas_call(
        kernel,
        out_shape=jax.ShapeDtypeStruct(out_shape, dtype),
        grid_spec=pltpu.PrefetchScalarGridSpec(
            num_scalar_prefetch=0,
            grid=grid,
            in_specs=[in_spec],
            out_specs=pl.BlockSpec(out_block, out_index_map),
        ),
        compiler_params=pltpu.CompilerParams(
            dimension_semantics=("parallel",) * len(grid),
            vmem_limit_bytes=vmem_limit,
        ),
        cost_estimate=pl.CostEstimate(
            flops=0, transcendentals=0, bytes_accessed=2 * total_bytes),
    )


def permute2d(x, perm, *, force_pallas=False, min_pallas_bytes=4 << 20,
              max_step_bytes=None, input_buffers=None):
    """Pallas equivalent of Permute2d(shape=perm).forward(x)."""
    perm = tuple(int(p) for p in perm)
    assert x.ndim == len(perm) and sorted(perm) == list(range(x.ndim)), perm

    if perm == tuple(range(x.ndim)):
        return x

    out_shape = tuple(x.shape[a] for a in perm)
    total_bytes = x.size * jnp.dtype(x.dtype).itemsize
    if not force_pallas and total_bytes < min_pallas_bytes:
        # Small tensors: custom-call launch + per-step overhead loses to an XLA
        # transpose that fuses into neighbouring ops.
        return jnp.transpose(x, perm)

    red_shape, red_perm = _normalize(x.shape, perm)
    if len(red_shape) <= 1 or red_perm == tuple(range(len(red_perm))):
        return jnp.reshape(x, out_shape)      # permutation is a pure relabel/reshape

    if not force_pallas and red_shape[red_perm[-1]] < _LANE:
        # Even after folding, the output lane would be <128 wide (masked vst.msk,
        # thin DMA rows) -> let XLA handle it.
        return jnp.transpose(x, perm)

    call = _build_permute_call(red_shape, x.dtype, red_perm,
                               max_step_bytes=max_step_bytes,
                               input_buffers=input_buffers)
    if call is None:
        # Shape cannot be tiled within the per-chip VMEM budget (e.g. huge prime
        # dims); fall back to XLA rather than fail to compile.
        return jnp.transpose(x, perm)

    y = call(jnp.reshape(x, red_shape))
    return jnp.reshape(y, out_shape)


if __name__ == "__main__":
    key = jax.random.PRNGKey(0)
    k1, k2, k3 = jax.random.split(key, 3)

    # NCHW input matching the CLEEGN module: batch=2, channels=4, H=16, W=16.
    x = jax.random.normal(k1, (2, 4, 16, 16), dtype=jnp.float32)
    # Larger inputs to exercise the slab-splitting / lane-moving paths.
    big = jax.random.normal(k2, (2, 64, 32, 128), dtype=jnp.float32)
    mat = jax.random.normal(k3, (256, 512), dtype=jnp.float32)

    tests = [
        # default Permute2d config: swap C and H (lane fixed, sublane relayout)
        (x, (0, 2, 1, 3), {}),
        # leading-axes swap: H*W coalesces into a 256-wide lane-dense copy
        (x, (1, 0, 2, 3), {}),
        # forces resident-slab splitting + squeezed grid axes (grid (2, 4))
        (big, (0, 2, 1, 3), {"max_step_bytes": 256 * 1024}),
        # lane-moving 2-D transpose split into 128-wide chunks (grid (4,))
        (mat, (1, 0), {"max_step_bytes": 128 * 1024}),
    ]

    for xi, perm, kw in tests:
        y = jax.block_until_ready(permute2d(xi, perm, force_pallas=True, **kw))
        y_ref = jnp.transpose(xi, perm)
        assert y.shape == y_ref.shape and y.dtype == y_ref.dtype, perm
        assert jnp.array_equal(y, y_ref), f"Pallas permute mismatch for perm={perm}"

    print("KERNEL_OK")
</pallas_src>

<mosaic_0001>
module attributes {stable_mosaic.version = 11 : i64} {
  func.func @kernel(%arg0: i32, %arg1: memref<2x4x16x16xf32, #tpu.memory_space<vmem>>, %arg2: memref<2x16x4x16xf32, #tpu.memory_space<vmem>>) attributes {dimension_semantics = [#tpu.dimension_semantics<parallel>], iteration_bounds = array<i64: 1>, scalar_prefetch = 0 : i64, scratch_operands = 0 : i64, tpu.core_type = #tpu.core_type<tc>, window_params = [{pipeline_mode = #tpu.pipeline_mode<synchronous>, transform_indices = @transform_0, window_bounds = array<i64: 2, 4, 16, 16>}, {pipeline_mode = #tpu.pipeline_mode<synchronous>, transform_indices = @transform_1, window_bounds = array<i64: 2, 16, 4, 16>}]} {
    %c0 = arith.constant 0 : index
    %c0_0 = arith.constant 0 : index
    %c0_1 = arith.constant 0 : index
    %c0_2 = arith.constant 0 : index
    %0 = vector.load %arg1[%c0, %c0_0, %c0_1, %c0_2] : memref<2x4x16x16xf32, #tpu.memory_space<vmem>>, vector<2x4x16x16xf32>
    %1 = tpu.transpose %0, [0, 2, 1, 3] : vector<2x4x16x16xf32> -> vector<2x16x4x16xf32>
    %c0_3 = arith.constant 0 : index
    %c0_4 = arith.constant 0 : index
    %c0_5 = arith.constant 0 : index
    %c0_6 = arith.constant 0 : index
    %2 = vector.load %arg2[%c0_3, %c0_4, %c0_5, %c0_6] : memref<2x16x4x16xf32, #tpu.memory_space<vmem>>, vector<2x16x4x16xf32>
    tpu.vector_store %arg2[%c0_3, %c0_4, %c0_5, %c0_6], %1 {strides = array<i32>} : memref<2x16x4x16xf32, #tpu.memory_space<vmem>>, vector<2x16x4x16xf32>,
    return
  }
  func.func @transform_0(%arg0: i32) -> (i32, i32, i32, i32) {
    %c0_i32 = arith.constant 0 : i32
    %c0_i32_0 = arith.constant 0 : i32
    %c0_i32_1 = arith.constant 0 : i32
    %c0_i32_2 = arith.constant 0 : i32
    %c0_i32_3 = arith.constant 0 : i32
    return %c0_i32, %c0_i32_0, %c0_i32_1, %c0_i32_2 : i32, i32, i32, i32
  }
  func.func @transform_1(%arg0: i32) -> (i32, i32, i32, i32) {
    %c0_i32 = arith.constant 0 : i32
    %c0_i32_0 = arith.constant 0 : i32
    %c0_i32_1 = arith.constant 0 : i32
    %c0_i32_2 = arith.constant 0 : i32
    %c0_i32_3 = arith.constant 0 : i32
    return %c0_i32, %c0_i32_0, %c0_i32_1, %c0_i32_2 : i32, i32, i32, i32
  }
}

</mosaic_0001>

<llo_original>
// kernel: tpu_custom_call.1
$region0: #{tpu_custom_call.1}
  #allocation0 [shape = 'u32[]', space=smem, size = 0x4, offset = 0x4, fixed_abs, tag = 'smem constant byte address 0x4 - core index']
  #allocation1 [shape = 'u32[72,128]{1,0:T(1,128)}', space=vmem, size = 0x9000, scoped, tag = 'internal scratch']
  %s0 = inlined_call_operand.hbm [shape: f32[2,4,16,16], index: 0, kind: input, shape index: {}]
  %s1 = inlined_call_operand.hbm [shape: f32[2,16,4,16], index: 1, kind: output, shape index: {}]
  %s2 = sld [smem:[#allocation0]]
  $region18: #{tpu_custom_call.1} parent=0
    _
  %s4 = ssub.s32 1, %s2
  %s5 = scalar_select 0, %s4, %s2
  $region1: #{tpu_custom_call.1} parent=0
    #allocation2 [shape = 'u8[65536]{0}', space=vmem, size = 0x10000, scoped, tag = 'input window, operand 0, single buffered']
    #allocation3 [shape = 's32[1]{0}', space=sflag, size = 0x4, scoped, tag = 'scoped memory for tpu_custom_call.1']
    #allocation4 [shape = 's32[1]{0}', space=sflag, size = 0x4, scoped, tag = 'scoped memory for tpu_custom_call.1']
    #allocation5 [shape = 'u8[65536]{0}', space=vmem, size = 0x10000, scoped, tag = 'output window, operand 0, single buffered']
    %6 = vsyncpa [#allocation3], 0
    %7 = vsyncpa [#allocation4], 0
    // Predicated region
    $region2: #{tpu_custom_call.1} parent=1 // pred_check
      _
    $region3: #{tpu_custom_call.1} parent=1 // pred_check_branch
      %9 = sbr.rel (0) target = $region5
    $region4: #{tpu_custom_call.1} parent=1 // pred_region
      %11 = vsyncadd [#allocation3], 0
      %s12 = sshll.u32 %s0, 4
      %s13 = int_to_ptr.hbm [resolvable:$true] %s12
      %s14 = sshll.u32 [#allocation2], 4
      %s15 = int_to_ptr.vmem [resolvable:$true] %s14
      %20 = dma.hbm_to_vmem [thread:$0]  %s13, 2048, %s15, [#allocation3], 128, 128, 8
    $region5: #{tpu_custom_call.1} parent=1 // pred_fallthru
      _
    // Predicated region
    $region6: #{tpu_custom_call.1} parent=1 // pred_check
      _
    $region7: #{tpu_custom_call.1} parent=1 // pred_check_branch
      %22 = sbr.rel (0) target = $region9
    $region8: #{tpu_custom_call.1} parent=1 // pred_region
      %24 = dma.done [#allocation3], 2048
    $region9: #{tpu_custom_call.1} parent=1 // pred_fallthru
      _
    %v25 = vld [vmem:[#allocation2] sm:$0xff]
    %v26 = vld [vmem:[#allocation2 + $0x8] sm:$0xff]
    %v27 = vld [vmem:[#allocation2 + $0x10] sm:$0xff]
    %v28 = vld [vmem:[#allocation2 + $0x18] sm:$0xff]
    %v29 = vld [vmem:[#allocation2 + $0x20] sm:$0xff]
    %v30 = vld [vmem:[#allocation2 + $0x28] sm:$0xff]
    %v31 = vld [vmem:[#allocation2 + $0x30] sm:$0xff]
    %v32 = vld [vmem:[#allocation2 + $0x38] sm:$0xff]
    %v33 = vld [vmem:[#allocation2 + $0x40] sm:$0xff]
    %v34 = vld [vmem:[#allocation2 + $0x48] sm:$0xff]
    %v35 = vld [vmem:[#allocation2 + $0x50] sm:$0xff]
    %v36 = vld [vmem:[#allocation2 + $0x58] sm:$0xff]
    %v37 = vld [vmem:[#allocation2 + $0x60] sm:$0xff]
    %v38 = vld [vmem:[#allocation2 + $0x68] sm:$0xff]
    %v39 = vld [vmem:[#allocation2 + $0x70] sm:$0xff]
    %v40 = vld [vmem:[#allocation2 + $0x78] sm:$0xff]
    %v41 = vrot.slane %v29, 4
    %vm42 = vcmask 1047556
    %v43 = vsel %vm42, %v41, %v25
    %v44 = vrot.slane %v25, 4
    %v45 = vsel %vm42, %v29, %v44
    %v47 = vunpack.c.l.s4 1983009808
    %v48 = vunpack.c.0.s8 %v47
    %v49 = vperm.slane %v43, %v48
    %v51 = vunpack.c.l.s4 1983009808
    %v52 = vunpack.c.0.s8 %v51
    %v53 = vperm.slane %v45, %v52
    %v54 = vrot.slane %v31, 4
    %v55 = vsel %vm42, %v54, %v27
    %v56 = vrot.slane %v27, 4
    %v57 = vsel %vm42, %v31, %v56
    %v59 = vunpack.c.l.s4 1983009808
    %v60 = vunpack.c.0.s8 %v59
    %v61 = vperm.slane %v55, %v60
    %v63 = vunpack.c.l.s4 1983009808
    %v64 = vunpack.c.0.s8 %v63
    %v65 = vperm.slane %v57, %v64
    %v66 = vrot.slane %v61, 4
    %v67 = vsel %vm42, %v66, %v49
    %v68 = vrot.slane %v49, 4
    %v69 = vsel %vm42, %v61, %v68
    %v71 = vunpack.c.l.s4 1934713408
    %v72 = vunpack.c.0.s8 %v71
    %v73 = vperm.slane %v67, %v72
    %v75 = vunpack.c.l.s4 1934713408
    %v76 = vunpack.c.0.s8 %v75
    %v77 = vperm.slane %v69, %v76
    %v78 = vrot.slane %v65, 4
    %v79 = vsel %vm42, %v78, %v53
    %v80 = vrot.slane %v53, 4
    %v81 = vsel %vm42, %v65, %v80
    %v83 = vunpack.c.l.s4 1934713408
    %v84 = vunpack.c.0.s8 %v83
    %v85 = vperm.slane %v79, %v84
    %v87 = vunpack.c.l.s4 1934713408
    %v88 = vunpack.c.0.s8 %v87
    %v89 = vperm.slane %v81, %v88
    %v90 = vrot.slane %v73, 4
    %v91 = vsel %vm42, 0.0, %v90
    %v92 = vrot.slane %v77, 4
    %v93 = vsel %vm42, 0.0, %v92
    %v94 = vrot.slane %v85, 4
    %v95 = vsel %vm42, 0.0, %v94
    %v96 = vrot.slane %v89, 4
    %v97 = vsel %vm42, 0.0, %v96
    %v98 = vrot.slane %v30, 4
    %v99 = vsel %vm42, %v98, %v26
    %v100 = vrot.slane %v26, 4
    %v101 = vsel %vm42, %v30, %v100
    %v103 = vunpack.c.l.s4 1983009808
    %v104 = vunpack.c.0.s8 %v103
    %v105 = vperm.slane %v99, %v104
    %v107 = vunpack.c.l.s4 1983009808
    %v108 = vunpack.c.0.s8 %v107
    %v109 = vperm.slane %v101, %v108
    %v110 = vrot.slane %v32, 4
    %v111 = vsel %vm42, %v110, %v28
    %v112 = vrot.slane %v28, 4
    %v113 = vsel %vm42, %v32, %v112
    %v115 = vunpack.c.l.s4 1983009808
    %v116 = vunpack.c.0.s8 %v115
    %v117 = vperm.slane %v111, %v116
    %v119 = vunpack.c.l.s4 1983009808
    %v120 = vunpack.c.0.s8 %v119
    %v121 = vperm.slane %v113, %v120
    %v122 = vrot.slane %v117, 4
    %v123 = vsel %vm42, %v122, %v105
    %v124 = vrot.slane %v105, 4
    %v125 = vsel %vm42, %v117, %v124
    %v127 = vunpack.c.l.s4 1934713408
    %v128 = vunpack.c.0.s8 %v127
    %v129 = vperm.slane %v123, %v128
    %v131 = vunpack.c.l.s4 1934713408
    %v132 = vunpack.c.0.s8 %v131
    %v133 = vperm.slane %v125, %v132
    %v134 = vrot.slane %v121, 4
    %v135 = vsel %vm42, %v134, %v109
    %v136 = vrot.slane %v109, 4
    %v137 = vsel %vm42, %v121, %v136
    %v139 = vunpack.c.l.s4 1934713408
    %v140 = vunpack.c.0.s8 %v139
    %v141 = vperm.slane %v135, %v140
    %v143 = vunpack.c.l.s4 1934713408
    %v144 = vunpack.c.0.s8 %v143
    %v145 = vperm.slane %v137, %v144
    %v146 = vrot.slane %v129, 4
    %v147 = vsel %vm42, 0.0, %v146
    %v148 = vrot.slane %v133, 4
    %v149 = vsel %vm42, 0.0, %v148
    %v150 = vrot.slane %v141, 4
    %v151 = vsel %vm42, 0.0, %v150
    %v152 = vrot.slane %v145, 4
    %v153 = vsel %vm42, 0.0, %v152
    %v154 = vrot.slane %v37, 4
    %v155 = vsel %vm42, %v154, %v33
    %v156 = vrot.slane %v33, 4
    %v157 = vsel %vm42, %v37, %v156
    %v159 = vunpack.c.l.s4 1983009808
    %v160 = vunpack.c.0.s8 %v159
    %v161 = vperm.slane %v155, %v160
    %v163 = vunpack.c.l.s4 1983009808
    %v164 = vunpack.c.0.s8 %v163
    %v165 = vperm.slane %v157, %v164
    %v166 = vrot.slane %v39, 4
    %v167 = vsel %vm42, %v166, %v35
    %v168 = vrot.slane %v35, 4
    %v169 = vsel %vm42, %v39, %v168
    %v171 = vunpack.c.l.s4 1983009808
    %v172 = vunpack.c.0.s8 %v171
    %v173 = vperm.slane %v167, %v172
    %v175 = vunpack.c.l.s4 1983009808
    %v176 = vunpack.c.0.s8 %v175
    %v177 = vperm.slane %v169, %v176
    %v178 = vrot.slane %v173, 4
    %v179 = vsel %vm42, %v178, %v161
    %v180 = vrot.slane %v161, 4
    %v181 = vsel %vm42, %v173, %v180
    %v183 = vunpack.c.l.s4 1934713408
    %v184 = vunpack.c.0.s8 %v183
    %v185 = vperm.slane %v179, %v184
    %v187 = vunpack.c.l.s4 1934713408
    %v188 = vunpack.c.0.s8 %v187
    %v189 = vperm.slane %v181, %v188
    %v190 = vrot.slane %v177, 4
    %v191 = vsel %vm42, %v190, %v165
    %v192 = vrot.slane %v165, 4
    %v193 = vsel %vm42, %v177, %v192
    %v195 = vunpack.c.l.s4 1934713408
    %v196 = vunpack.c.0.s8 %v195
    %v197 = vperm.slane %v191, %v196
    %v199 = vunpack.c.l.s4 1934713408
    %v200 = vunpack.c.0.s8 %v199
    %v201 = vperm.slane %v193, %v200
    %v202 = vrot.slane %v185, 4
    %v203 = vsel %vm42, 0.0, %v202
    %v204 = vrot.slane %v189, 4
    %v205 = vsel %vm42, 0.0, %v204
    %v206 = vrot.slane %v197, 4
    %v207 = vsel %vm42, 0.0, %v206
    %v208 = vrot.slane %v201, 4
    %v209 = vsel %vm42, 0.0, %v208
    %v210 = vrot.slane %v38, 4
    %v211 = vsel %vm42, %v210, %v34
    %v212 = vrot.slane %v34, 4
    %v213 = vsel %vm42, %v38, %v212
    %v215 = vunpack.c.l.s4 1983009808
    %v216 = vunpack.c.0.s8 %v215
    %v217 = vperm.slane %v211, %v216
    %v219 = vunpack.c.l.s4 1983009808
    %v220 = vunpack.c.0.s8 %v219
    %v221 = vperm.slane %v213, %v220
    %v222 = vrot.slane %v40, 4
    %v223 = vsel %vm42, %v222, %v36
    %v224 = vrot.slane %v36, 4
    %v225 = vsel %vm42, %v40, %v224
    %v227 = vunpack.c.l.s4 1983009808
    %v228 = vunpack.c.0.s8 %v227
    %v229 = vperm.slane %v223, %v228
    %v231 = vunpack.c.l.s4 1983009808
    %v232 = vunpack.c.0.s8 %v231
    %v233 = vperm.slane %v225, %v232
    %v234 = vrot.slane %v229, 4
    %v235 = vsel %vm42, %v234, %v217
    %v236 = vrot.slane %v217, 4
    %v237 = vsel %vm42, %v229, %v236
    %v239 = vunpack.c.l.s4 1934713408
    %v240 = vunpack.c.0.s8 %v239
    %v241 = vperm.slane %v235, %v240
    %v243 = vunpack.c.l.s4 1934713408
    %v244 = vunpack.c.0.s8 %v243
    %v245 = vperm.slane %v237, %v244
    %v246 = vrot.slane %v233, 4
    %v247 = vsel %vm42, %v246, %v221
    %v248 = vrot.slane %v221, 4
    %v249 = vsel %vm42, %v233, %v248
    %v251 = vunpack.c.l.s4 1934713408
    %v252 = vunpack.c.0.s8 %v251
    %v253 = vperm.slane %v247, %v252
    %v255 = vunpack.c.l.s4 1934713408
    %v256 = vunpack.c.0.s8 %v255
    %v257 = vperm.slane %v249, %v256
    %v258 = vrot.slane %v241, 4
    %v259 = vsel %vm42, 0.0, %v258
    %v260 = vrot.slane %v245, 4
    %v261 = vsel %vm42, 0.0, %v260
    %v262 = vrot.slane %v253, 4
    %v263 = vsel %vm42, 0.0, %v262
    %v264 = vrot.slane %v257, 4
    %v265 = vsel %vm42, 0.0, %v264
    %vm266 = vcmask 125952
    %267 = vst.msk [vmem:[#allocation5] sm:$0xf] %vm266, %v73
    %268 = vst.msk [vmem:[#allocation5 + $0x4] sm:$0xf] %vm266, %v91
    %269 = vst.msk [vmem:[#allocation5 + $0x8] sm:$0xf] %vm266, %v77
    %270 = vst.msk [vmem:[#allocation5 + $0xc] sm:$0xf] %vm266, %v93
    %271 = vst.msk [vmem:[#allocation5 + $0x10] sm:$0xf] %vm266, %v85
    %272 = vst.msk [vmem:[#allocation5 + $0x14] sm:$0xf] %vm266, %v95
    %273 = vst.msk [vmem:[#allocation5 + $0x18] sm:$0xf] %vm266, %v89
    %274 = vst.msk [vmem:[#allocation5 + $0x1c] sm:$0xf] %vm266, %v97
    %275 = vst.msk [vmem:[#allocation5 + $0x20] sm:$0xf] %vm266, %v129
    %276 = vst.msk [vmem:[#allocation5 + $0x24] sm:$0xf] %vm266, %v147
    %277 = vst.msk [vmem:[#allocation5 + $0x28] sm:$0xf] %vm266, %v133
    %278 = vst.msk [vmem:[#allocation5 + $0x2c] sm:$0xf] %vm266, %v149
    %279 = vst.msk [vmem:[#allocation5 + $0x30] sm:$0xf] %vm266, %v141
    %280 = vst.msk [vmem:[#allocation5 + $0x34] sm:$0xf] %vm266, %v151
    %281 = vst.msk [vmem:[#allocation5 + $0x38] sm:$0xf] %vm266, %v145
    %282 = vst.msk [vmem:[#allocation5 + $0x3c] sm:$0xf] %vm266, %v153
    %283 = vst.msk [vmem:[#allocation5 + $0x40] sm:$0xf] %vm266, %v185
    %284 = vst.msk [vmem:[#allocation5 + $0x44] sm:$0xf] %vm266, %v203
    %285 = vst.msk [vmem:[#allocation5 + $0x48] sm:$0xf] %vm266, %v189
    %286 = vst.msk [vmem:[#allocation5 + $0x4c] sm:$0xf] %vm266, %v205
    %287 = vst.msk [vmem:[#allocation5 + $0x50] sm:$0xf] %vm266, %v197
    %288 = vst.msk [vmem:[#allocation5 + $0x54] sm:$0xf] %vm266, %v207
    %289 = vst.msk [vmem:[#allocation5 + $0x58] sm:$0xf] %vm266, %v201
    %290 = vst.msk [vmem:[#allocation5 + $0x5c] sm:$0xf] %vm266, %v209
    %291 = vst.msk [vmem:[#allocation5 + $0x60] sm:$0xf] %vm266, %v241
    %292 = vst.msk [vmem:[#allocation5 + $0x64] sm:$0xf] %vm266, %v259
    %293 = vst.msk [vmem:[#allocation5 + $0x68] sm:$0xf] %vm266, %v245
    %294 = vst.msk [vmem:[#allocation5 + $0x6c] sm:$0xf] %vm266, %v261
    %295 = vst.msk [vmem:[#allocation5 + $0x70] sm:$0xf] %vm266, %v253
    %296 = vst.msk [vmem:[#allocation5 + $0x74] sm:$0xf] %vm266, %v263
    %297 = vst.msk [vmem:[#allocation5 + $0x78] sm:$0xf] %vm266, %v257
    %298 = vst.msk [vmem:[#allocation5 + $0x7c] sm:$0xf] %vm266, %v265
    // Predicated region
    $region10: #{tpu_custom_call.1} parent=1 // pred_check
      _
    $region11: #{tpu_custom_call.1} parent=1 // pred_check_branch
      %300 = sbr.rel (0) target = $region13
    $region12: #{tpu_custom_call.1} parent=1 // pred_region
      %302 = vsyncadd [#allocation4], 0
      %s303 = sshll.u32 [#allocation5], 4
      %s304 = int_to_ptr.vmem [resolvable:$true] %s303
      %s305 = sshll.u32 %s1, 4
      %s306 = int_to_ptr.hbm [resolvable:$true] %s305
      %311 = dma.vmem_to_hbm [thread:$0]  %s304, 2048, %s306, [#allocation4], 64, 64, 4
    $region13: #{tpu_custom_call.1} parent=1 // pred_fallthru
      _
    // Predicated region
    $region14: #{tpu_custom_call.1} parent=1 // pred_check
      _
    $region15: #{tpu_custom_call.1} parent=1 // pred_check_branch
      %313 = sbr.rel (0) target = $region17
    $region16: #{tpu_custom_call.1} parent=1 // pred_region
      %315 = dma.done [#allocation4], 2048
    $region17: #{tpu_custom_call.1} parent=1 // pred_fallthru
      _
    %316 = vsyncpa [#allocation3], 1
    %317 = vsyncpa [#allocation4], 1

</llo_original>
